<compile_context>
chip_gen: v7x
topology: tpu7x:2x2x1
jax: 0.10.0
libtpu: 0.0.40
codegen_flags: <defaults>
</compile_context>

<pallas_src>
import functools

import jax
import jax.numpy as jnp
from jax import lax
from jax.experimental import pallas as pl
from jax.experimental.pallas import tpu as pltpu


def _gat_attn_kernel(feat_ref, el_ref, er_ref, adjt_ref, bns_ref, bnb_ref, out_ref, *,
                     num_heads, out_feats, negative_slope, apply_bn_relu):
    """Dense GAT attention for one destination-node tile.

    feat_ref: (N, H*F)  bf16  projected source features (all heads, lane-dense)
    el_ref:   (H, N)    f32   <W_h x_u, attn_l_h>  source logits (lane-dense rows)
    er_ref:   (TN, H)   f32   <W_h x_v, attn_r_h>  dst logits for this tile
    adjt_ref: (TN, N)   int8  dst-major adjacency tile (adjT[v, u] = 1 iff u -> v)
    bns_ref/bnb_ref: (1, H*F) eval-mode BatchNorm scale / shift
    out_ref:  (TN, H*F)       output tile (bf16 hidden layers, f32 last layer)
    """
    H, F = num_heads, out_feats
    mask = adjt_ref[...] != 0                     # one compare, shared by all heads
    neg_inf = jnp.float32(-1e30)
    slope = jnp.float32(negative_slope)

    for h in range(H):
        el_row = el_ref[h:h + 1, :]               # (1, N)  broadcast over dst rows
        er_col = er_ref[:, h:h + 1]               # (TN, 1) broadcast over src lanes
        e = er_col + el_row                       # (TN, N) raw attention logits
        e = jnp.maximum(e, slope * e)             # LeakyReLU (valid for 0 < slope < 1)
        e = jnp.where(mask, e, neg_inf)           # mask non-edges
        m = jnp.max(e, axis=1, keepdims=True)     # row max (XLU, off the VALU slot)
        p = jnp.exp(e - m)                        # masked entries underflow to 0
        # NOTE: relies on every dst row having >= 1 incoming edge (self-loops);
        # zero in-degree rows would degenerate to a mean over all sources (the
        # PyTorch/DGL reference asserts on zero in-degree anyway).
        denom = jnp.sum(p, axis=1, keepdims=True)            # (TN, 1) f32 exact
        # rst[v] = sum_u softmax_u(e)[v,u] * feat[u]; normalize AFTER the MXU
        # matmul: TN*F multiplies instead of TN*N.
        acc = jnp.dot(p.astype(jnp.bfloat16), feat_ref[:, h * F:(h + 1) * F],
                      preferred_element_type=jnp.float32)    # (TN, F) on the MXU
        inv = pl.reciprocal(jnp.maximum(denom, jnp.float32(1e-20)), approx=True)
        out_h = acc * inv
        if apply_bn_relu:                          # fused eval-BN + ReLU epilogue
            out_h = out_h * bns_ref[:, h * F:(h + 1) * F] + bnb_ref[:, h * F:(h + 1) * F]
            out_h = jnp.maximum(out_h, 0.0)
        out_ref[:, h * F:(h + 1) * F] = out_h.astype(out_ref.dtype)


def _round_up(x, m):
    return -(-x // m) * m


def _vmem_limit_bytes():
    """Generation-aware VMEM limit: ~80% of physical VMEM (v7x 64 MiB -> ~51 MiB,
    v5e/v6e 128 MiB -> ~102 MiB); conservative 64 MiB assumption as fallback."""
    try:
        cap = int(pltpu.get_tpu_info().vmem_capacity_bytes)
    except Exception:
        cap = 64 * 1024 * 1024
    if cap <= 0:
        cap = 64 * 1024 * 1024
    return min(int(cap * 0.8), 104 * 1024 * 1024)


def _pick_dst_tile(n_dst, n_src, hf, out_bytes, budget_bytes):
    """Largest dst-node tile (multiple of 32, <= 1024) whose VMEM working set fits.

    Counts the double-buffered pipeline blocks (adjT int8, er, out), the constant
    feat/el/bn blocks, and ~3 live (TN, N) f32 in-kernel temporaries (e / p /
    attention probs) that dominate for large graphs.
    """
    if n_dst <= 32:
        return n_dst                               # single full-extent block
    n_src_l = _round_up(n_src, 128)                # lane-padded source axis
    hf_l = _round_up(hf, 128)
    fixed = 2 * (n_src * hf_l * 2                  # feat slab (bf16)
                 + 8 * n_src_l * 4                 # el (H -> 8 sublanes)
                 + 2 * 8 * hf_l * 4)               # bn scale / shift
    avail = max(budget_bytes - fixed, 2 * 1024 * 1024)

    def per_tile(tn):
        pipelined = 2 * (tn * n_src_l              # adjT tile, int8
                         + tn * 128 * 4            # er tile (lane-padded)
                         + tn * hf_l * out_bytes)  # output tile
        temps = 12 * tn * n_src_l                  # ~3 live (TN, N) f32 temporaries
        return pipelined + temps

    tn = min((n_dst // 32) * 32, 1024)
    while tn > 32 and per_tile(tn) > avail:
        tn -= 32
    return tn


def gat_conv(x, adj_t, w, attn_l, attn_r, *, bn=None, negative_slope=0.2,
             apply_bn_relu=False, out_dtype=jnp.float32):
    """One GATConv layer (eval mode).

    x:       (N, Din) f32 or bf16 node features
    adj_t:   (N, N) int8, dst-major: adj_t[v, u] = 1 iff edge u -> v
    w:       (H, F, Din)  torch fc.weight reshaped
    attn_l:  (H, 1, F), attn_r: (H, 1, F)
    bn:      optional eval-mode BatchNorm1d params over H*F features
    Returns (N, H*F) out_dtype (heads concatenated along the feature axis).
    """
    N, Din = x.shape
    H, F, _ = w.shape
    HF = H * F

    # --- projection, hoisted out of the kernel (plain XLA matmul) -------------
    # One lane-dense matmul computes all heads plus both folded attention dots:
    #   proj = x @ [W_allheads | Wr_fold | Wl_fold]  ->  [feat | er | el]
    w_mat = jnp.transpose(w, (2, 0, 1)).reshape(Din, HF)        # col h*F+f = w[h, f, :]
    al = attn_l[:, 0, :]                                        # (H, F)
    ar = attn_r[:, 0, :]
    wl = jnp.einsum("hfd,hf->dh", w, al)                        # (Din, H) folded attn_l
    wr = jnp.einsum("hfd,hf->dh", w, ar)                        # (Din, H) folded attn_r
    w_cat = jnp.concatenate([w_mat, wr, wl], axis=1).astype(jnp.bfloat16)  # (Din, HF+2H)
    proj = jnp.dot(x.astype(jnp.bfloat16), w_cat,
                   preferred_element_type=jnp.float32)          # (N, HF + 2H)
    feat = proj[:, :HF].astype(jnp.bfloat16)                    # (N, HF) source features
    er = proj[:, HF:HF + H]                                     # (N, H)  dst logits
    el = jnp.transpose(proj[:, HF + H:])                        # (H, N)  src logits

    # --- eval-mode BatchNorm folded to scale / shift ---------------------------
    if bn is not None:
        scale = bn["weight"] * lax.rsqrt(bn["running_var"] + 1e-5)
        shift = bn["bias"] - bn["running_mean"] * scale
    else:
        scale = jnp.ones((HF,), jnp.float32)
        shift = jnp.zeros((HF,), jnp.float32)
    scale = scale.reshape(1, HF).astype(jnp.float32)
    shift = shift.reshape(1, HF).astype(jnp.float32)

    # --- tiling -----------------------------------------------------------------
    vmem_limit = _vmem_limit_bytes()
    out_bytes = jnp.dtype(out_dtype).itemsize
    TN = _pick_dst_tile(N, N, HF, out_bytes, int(vmem_limit * 0.9))
    grid = (pl.cdiv(N, TN),)          # partial last tile handled by masked writes

    kernel = functools.partial(
        _gat_attn_kernel, num_heads=H, out_feats=F,
        negative_slope=negative_slope, apply_bn_relu=apply_bn_relu)

    # NOTE: feat/el/bn blocks have constant index maps; after the projection
    # hoist they are small, so the default double-buffering waste is negligible
    # (pl.Buffered(1) could trim it further).  On v5e, pl.Buffered(3) on the
    # adjT spec can hide exposed DMA waits if a trace shows them.
    return pl.pallas_call(
        kernel,
        out_shape=jax.ShapeDtypeStruct((N, HF), out_dtype),
        grid_spec=pltpu.PrefetchScalarGridSpec(
            num_scalar_prefetch=0,
            grid=grid,                                           # dst-node tiles
            in_specs=[
                pl.BlockSpec((N, HF), lambda j: (0, 0)),         # projected features
                pl.BlockSpec((H, N), lambda j: (0, 0)),          # el (source logits)
                pl.BlockSpec((TN, H), lambda j: (j, 0)),         # er (dst logits, tile)
                pl.BlockSpec((TN, N), lambda j: (j, 0)),         # adjT tile (int8)
                pl.BlockSpec((1, HF), lambda j: (0, 0)),         # bn scale
                pl.BlockSpec((1, HF), lambda j: (0, 0)),         # bn shift
            ],
            out_specs=pl.BlockSpec((TN, HF), lambda j: (j, 0)),  # lane-dense output
        ),
        compiler_params=pltpu.CompilerParams(
            # Tiles are fully independent after the projection hoist -> shard the
            # dst axis across TensorCores (2 TCs on v7x; no-op on v5e/v6e).
            dimension_semantics=("parallel",),
            vmem_limit_bytes=vmem_limit,
        ),
    )(feat, el, er, adj_t, scale, shift)


def _xavier_normal(key, shape, fan_in, fan_out, gain):
    std = gain * (2.0 / float(fan_in + fan_out)) ** 0.5
    return std * jax.random.normal(key, shape, dtype=jnp.float32)


def init_gat_params(key, in_feats, n_classes, n_hidden, n_layers, n_heads):
    gain = 2.0 ** 0.5  # nn.init.calculate_gain('relu')
    layers = []
    for i in range(n_layers):
        in_hidden = n_heads * n_hidden if i > 0 else in_feats
        out_hidden = n_hidden if i < n_layers - 1 else n_classes
        num_heads = n_heads if i < n_layers - 1 else 1
        key, kw, kl, kr = jax.random.split(key, 4)
        # fc.weight: torch shape (num_heads*out_hidden, in_hidden), stored as (H, F, Din)
        w = _xavier_normal(kw, (num_heads, out_hidden, in_hidden),
                           fan_in=in_hidden, fan_out=num_heads * out_hidden, gain=gain)
        # attn_l / attn_r: torch shape (1, H, F), stored as (H, 1, F)
        attn_l = _xavier_normal(kl, (num_heads, 1, out_hidden),
                                fan_in=num_heads * out_hidden, fan_out=out_hidden, gain=gain)
        attn_r = _xavier_normal(kr, (num_heads, 1, out_hidden),
                                fan_in=num_heads * out_hidden, fan_out=out_hidden, gain=gain)
        layer = {"w": w, "attn_l": attn_l, "attn_r": attn_r}
        if i < n_layers - 1:
            dim = n_heads * out_hidden
            layer["bn"] = {
                "weight": jnp.ones((dim,), jnp.float32),
                "bias": jnp.zeros((dim,), jnp.float32),
                "running_mean": jnp.zeros((dim,), jnp.float32),
                "running_var": jnp.ones((dim,), jnp.float32),
            }
        layers.append(layer)
    return {"layers": layers, "bias_last": jnp.zeros((n_classes,), jnp.float32)}


def gat_forward(feat, adj, params, n_layers):
    # adj[u, v] = 1 iff edge u -> v; the kernel consumes the dst-major int8 form.
    adj_t = (jnp.transpose(adj) != 0).astype(jnp.int8)
    h = feat                                   # input_drop is identity in eval mode
    for i in range(n_layers):
        layer = params["layers"][i]
        last = i == n_layers - 1
        h = gat_conv(h, adj_t, layer["w"], layer["attn_l"], layer["attn_r"],
                     bn=None if last else layer.get("bn"),
                     apply_bn_relu=not last,
                     # hidden activations in bf16: halves inter-layer HBM traffic
                     out_dtype=jnp.float32 if last else jnp.bfloat16)
    # Last layer has a single head, so the mean over heads is the identity.
    return h + params["bias_last"]             # ElementWiseLinear (bias only)


if __name__ == "__main__":
    N = 16
    in_feats, n_classes, n_hidden, n_layers, n_heads = 16, 8, 32, 2, 2

    key = jax.random.PRNGKey(0)
    kf, ka, kp = jax.random.split(key, 3)

    feat = jax.random.normal(kf, (N, in_feats), dtype=jnp.float32)
    adj = (jax.random.uniform(ka, (N, N)) < 0.3).astype(jnp.float32)
    adj = jnp.maximum(adj, jnp.eye(N, dtype=jnp.float32))  # self loops -> in_degree >= 1

    params = init_gat_params(kp, in_feats, n_classes, n_hidden, n_layers, n_heads)

    fwd = jax.jit(functools.partial(gat_forward, n_layers=n_layers))
    out = jax.block_until_ready(fwd(feat, adj, params))

    assert out.shape == (N, n_classes), out.shape
    assert bool(jnp.all(jnp.isfinite(out)))
    print("KERNEL_OK")
</pallas_src>

<mosaic_0001>
module attributes {stable_mosaic.version = 11 : i64} {
  func.func @_gat_attn_kernel(%arg0: i32, %arg1: memref<16x64xbf16, #tpu.memory_space<vmem>>, %arg2: memref<2x16xf32, #tpu.memory_space<vmem>>, %arg3: memref<16x2xf32, #tpu.memory_space<vmem>>, %arg4: memref<16x16xi8, #tpu.memory_space<vmem>>, %arg5: memref<1x64xf32, #tpu.memory_space<vmem>>, %arg6: memref<1x64xf32, #tpu.memory_space<vmem>>, %arg7: memref<16x64xbf16, #tpu.memory_space<vmem>>) attributes {dimension_semantics = [#tpu.dimension_semantics<parallel>], iteration_bounds = array<i64: 1>, scalar_prefetch = 0 : i64, scratch_operands = 0 : i64, tpu.core_type = #tpu.core_type<tc>, window_params = [{pipeline_mode = #tpu.pipeline_mode<synchronous>, transform_indices = @transform_0, window_bounds = array<i64: 16, 64>}, {pipeline_mode = #tpu.pipeline_mode<synchronous>, transform_indices = @transform_1, window_bounds = array<i64: 2, 16>}, {transform_indices = @transform_2, window_bounds = array<i64: 16, 2>}, {transform_indices = @transform_3, window_bounds = array<i64: 16, 16>}, {pipeline_mode = #tpu.pipeline_mode<synchronous>, transform_indices = @transform_4, window_bounds = array<i64: 1, 64>}, {pipeline_mode = #tpu.pipeline_mode<synchronous>, transform_indices = @transform_5, window_bounds = array<i64: 1, 64>}, {transform_indices = @transform_6, window_bounds = array<i64: 16, 64>}]} {
    %c0 = arith.constant 0 : index
    %c0_0 = arith.constant 0 : index
    %0 = vector.load %arg4[%c0, %c0_0] : memref<16x16xi8, #tpu.memory_space<vmem>>, vector<16x16xi8>
    %c0_i8 = arith.constant 0 : i8
    %1 = vector.broadcast %c0_i8 : i8 to vector<16x16xi8>
    %2 = arith.cmpi ne, %0, %1 : vector<16x16xi8>
    %c0_1 = arith.constant 0 : index
    %c0_2 = arith.constant 0 : index
    %3 = vector.load %arg2[%c0_1, %c0_2] : memref<2x16xf32, #tpu.memory_space<vmem>>, vector<1x16xf32>
    %c0_3 = arith.constant 0 : index
    %c0_4 = arith.constant 0 : index
    %4 = vector.load %arg3[%c0_3, %c0_4] : memref<16x2xf32, #tpu.memory_space<vmem>>, vector<16x1xf32>
    %5 = vector.broadcast %4 : vector<16x1xf32> to vector<16x16xf32>
    %6 = vector.broadcast %3 : vector<1x16xf32> to vector<16x16xf32>
    %7 = arith.addf %5, %6 : vector<16x16xf32>
    %cst = arith.constant 2.000000e-01 : f32
    %8 = vector.broadcast %cst : f32 to vector<16x16xf32>
    %9 = arith.mulf %8, %7 : vector<16x16xf32>
    %10 = arith.maximumf %7, %9 : vector<16x16xf32>
    %cst_5 = arith.constant -1.000000e+30 : f32
    %11 = vector.broadcast %cst_5 : f32 to vector<16x16xf32>
    %12 = arith.select %2, %10, %11 : vector<16x16xi1>, vector<16x16xf32>
    %cst_6 = arith.constant dense<0xFF800000> : vector<16xf32>
    %13 = vector.multi_reduction <maximumf>, %12, %cst_6 [1] : vector<16x16xf32> to vector<16xf32>
    %14 = vector.shape_cast %13 : vector<16xf32> to vector<16x1xf32>
    %15 = vector.broadcast %14 : vector<16x1xf32> to vector<16x16xf32>
    %16 = arith.subf %12, %15 : vector<16x16xf32>
    %17 = math.exp %16 : vector<16x16xf32>
    %cst_7 = arith.constant dense<0.000000e+00> : vector<16xf32>
    %18 = vector.multi_reduction <add>, %17, %cst_7 [1] : vector<16x16xf32> to vector<16xf32>
    %19 = vector.shape_cast %18 : vector<16xf32> to vector<16x1xf32>
    %20 = arith.truncf %17 : vector<16x16xf32> to vector<16x16xbf16>
    %c0_8 = arith.constant 0 : index
    %c0_9 = arith.constant 0 : index
    %21 = vector.load %arg1[%c0_8, %c0_9] : memref<16x64xbf16, #tpu.memory_space<vmem>>, vector<16x32xbf16>
    %cst_10 = arith.constant dense<0.000000e+00> : vector<16x32xf32>
    %22 = tpu.matmul %20, %21, %cst_10 {dimension_numbers = #tpu.dot_dimension_numbers<[1], [0], [0], [1], [0, 0, 1, 1], [], []>} : vector<16x16xbf16>, vector<16x32xbf16>, vector<16x32xf32> -> vector<16x32xf32>
    %cst_11 = arith.constant 9.99999968E-21 : f32
    %23 = vector.broadcast %cst_11 : f32 to vector<16x1xf32>
    %24 = arith.maximumf %19, %23 : vector<16x1xf32>
    %25 = tpu.reciprocal %24 {approx = true} : vector<16x1xf32> -> vector<16x1xf32>
    %26 = vector.broadcast %25 : vector<16x1xf32> to vector<16x32xf32>
    %27 = arith.mulf %22, %26 : vector<16x32xf32>
    %c0_12 = arith.constant 0 : index
    %c0_13 = arith.constant 0 : index
    %28 = vector.load %arg5[%c0_12, %c0_13] : memref<1x64xf32, #tpu.memory_space<vmem>>, vector<1x32xf32>
    %29 = vector.broadcast %28 : vector<1x32xf32> to vector<16x32xf32>
    %30 = arith.mulf %27, %29 : vector<16x32xf32>
    %c0_14 = arith.constant 0 : index
    %c0_15 = arith.constant 0 : index
    %31 = vector.load %arg6[%c0_14, %c0_15] : memref<1x64xf32, #tpu.memory_space<vmem>>, vector<1x32xf32>
    %32 = vector.broadcast %31 : vector<1x32xf32> to vector<16x32xf32>
    %33 = arith.addf %30, %32 : vector<16x32xf32>
    %cst_16 = arith.constant 0.000000e+00 : f32
    %34 = vector.broadcast %cst_16 : f32 to vector<16x32xf32>
    %35 = arith.maximumf %33, %34 : vector<16x32xf32>
    %36 = arith.truncf %35 : vector<16x32xf32> to vector<16x32xbf16>
    %c0_17 = arith.constant 0 : index
    %c0_18 = arith.constant 0 : index
    %37 = vector.load %arg7[%c0_17, %c0_18] : memref<16x64xbf16, #tpu.memory_space<vmem>>, vector<16x32xbf16>
    tpu.vector_store %arg7[%c0_17, %c0_18], %36 {strides = array<i32>} : memref<16x64xbf16, #tpu.memory_space<vmem>>, vector<16x32xbf16>,
    %c1 = arith.constant 1 : index
    %c0_19 = arith.constant 0 : index
    %38 = vector.load %arg2[%c1, %c0_19] : memref<2x16xf32, #tpu.memory_space<vmem>>, vector<1x16xf32>
    %c0_20 = arith.constant 0 : index
    %c1_21 = arith.constant 1 : index
    %39 = vector.load %arg3[%c0_20, %c1_21] : memref<16x2xf32, #tpu.memory_space<vmem>>, vector<16x1xf32>
    %40 = vector.broadcast %39 : vector<16x1xf32> to vector<16x16xf32>
    %41 = vector.broadcast %38 : vector<1x16xf32> to vector<16x16xf32>
    %42 = arith.addf %40, %41 : vector<16x16xf32>
    %cst_22 = arith.constant 2.000000e-01 : f32
    %43 = vector.broadcast %cst_22 : f32 to vector<16x16xf32>
    %44 = arith.mulf %43, %42 : vector<16x16xf32>
    %45 = arith.maximumf %42, %44 : vector<16x16xf32>
    %cst_23 = arith.constant -1.000000e+30 : f32
    %46 = vector.broadcast %cst_23 : f32 to vector<16x16xf32>
    %47 = arith.select %2, %45, %46 : vector<16x16xi1>, vector<16x16xf32>
    %cst_24 = arith.constant dense<0xFF800000> : vector<16xf32>
    %48 = vector.multi_reduction <maximumf>, %47, %cst_24 [1] : vector<16x16xf32> to vector<16xf32>
    %49 = vector.shape_cast %48 : vector<16xf32> to vector<16x1xf32>
    %50 = vector.broadcast %49 : vector<16x1xf32> to vector<16x16xf32>
    %51 = arith.subf %47, %50 : vector<16x16xf32>
    %52 = math.exp %51 : vector<16x16xf32>
    %cst_25 = arith.constant dense<0.000000e+00> : vector<16xf32>
    %53 = vector.multi_reduction <add>, %52, %cst_25 [1] : vector<16x16xf32> to vector<16xf32>
    %54 = vector.shape_cast %53 : vector<16xf32> to vector<16x1xf32>
    %55 = arith.truncf %52 : vector<16x16xf32> to vector<16x16xbf16>
    %c0_26 = arith.constant 0 : index
    %c32 = arith.constant 32 : index
    %56 = vector.load %arg1[%c0_26, %c32] : memref<16x64xbf16, #tpu.memory_space<vmem>>, vector<16x32xbf16>
    %cst_27 = arith.constant dense<0.000000e+00> : vector<16x32xf32>
    %57 = tpu.matmul %55, %56, %cst_27 {dimension_numbers = #tpu.dot_dimension_numbers<[1], [0], [0], [1], [0, 0, 1, 1], [], []>} : vector<16x16xbf16>, vector<16x32xbf16>, vector<16x32xf32> -> vector<16x32xf32>
    %cst_28 = arith.constant 9.99999968E-21 : f32
    %58 = vector.broadcast %cst_28 : f32 to vector<16x1xf32>
    %59 = arith.maximumf %54, %58 : vector<16x1xf32>
    %60 = tpu.reciprocal %59 {approx = true} : vector<16x1xf32> -> vector<16x1xf32>
    %61 = vector.broadcast %60 : vector<16x1xf32> to vector<16x32xf32>
    %62 = arith.mulf %57, %61 : vector<16x32xf32>
    %c0_29 = arith.constant 0 : index
    %c32_30 = arith.constant 32 : index
    %63 = vector.load %arg5[%c0_29, %c32_30] : memref<1x64xf32, #tpu.memory_space<vmem>>, vector<1x32xf32>
    %64 = vector.broadcast %63 : vector<1x32xf32> to vector<16x32xf32>
    %65 = arith.mulf %62, %64 : vector<16x32xf32>
    %c0_31 = arith.constant 0 : index
    %c32_32 = arith.constant 32 : index
    %66 = vector.load %arg6[%c0_31, %c32_32] : memref<1x64xf32, #tpu.memory_space<vmem>>, vector<1x32xf32>
    %67 = vector.broadcast %66 : vector<1x32xf32> to vector<16x32xf32>
    %68 = arith.addf %65, %67 : vector<16x32xf32>
    %cst_33 = arith.constant 0.000000e+00 : f32
    %69 = vector.broadcast %cst_33 : f32 to vector<16x32xf32>
    %70 = arith.maximumf %68, %69 : vector<16x32xf32>
    %71 = arith.truncf %70 : vector<16x32xf32> to vector<16x32xbf16>
    %c0_34 = arith.constant 0 : index
    %c32_35 = arith.constant 32 : index
    %72 = vector.load %arg7[%c0_34, %c32_35] : memref<16x64xbf16, #tpu.memory_space<vmem>>, vector<16x32xbf16>
    tpu.vector_store %arg7[%c0_34, %c32_35], %71 {strides = array<i32>} : memref<16x64xbf16, #tpu.memory_space<vmem>>, vector<16x32xbf16>,
    return
  }
  func.func @transform_0(%arg0: i32) -> (i32, i32) {
    %c0_i32 = arith.constant 0 : i32
    %c0_i32_0 = arith.constant 0 : i32
    %c0_i32_1 = arith.constant 0 : i32
    return %c0_i32, %c0_i32_0 : i32, i32
  }
  func.func @transform_1(%arg0: i32) -> (i32, i32) {
    %c0_i32 = arith.constant 0 : i32
    %c0_i32_0 = arith.constant 0 : i32
    %c0_i32_1 = arith.constant 0 : i32
    return %c0_i32, %c0_i32_0 : i32, i32
  }
  func.func @transform_2(%arg0: i32) -> (i32, i32) {
    %c0_i32 = arith.constant 0 : i32
    %c0_i32_0 = arith.constant 0 : i32
    return %arg0, %c0_i32 : i32, i32
  }
  func.func @transform_3(%arg0: i32) -> (i32, i32) {
    %c0_i32 = arith.constant 0 : i32
    %c0_i32_0 = arith.constant 0 : i32
    return %arg0, %c0_i32 : i32, i32
  }
  func.func @transform_4(%arg0: i32) -> (i32, i32) {
    %c0_i32 = arith.constant 0 : i32
    %c0_i32_0 = arith.constant 0 : i32
    %c0_i32_1 = arith.constant 0 : i32
    return %c0_i32, %c0_i32_0 : i32, i32
  }
  func.func @transform_5(%arg0: i32) -> (i32, i32) {
    %c0_i32 = arith.constant 0 : i32
    %c0_i32_0 = arith.constant 0 : i32
    %c0_i32_1 = arith.constant 0 : i32
    return %c0_i32, %c0_i32_0 : i32, i32
  }
  func.func @transform_6(%arg0: i32) -> (i32, i32) {
    %c0_i32 = arith.constant 0 : i32
    %c0_i32_0 = arith.constant 0 : i32
    return %arg0, %c0_i32 : i32, i32
  }
}

module attributes {stable_mosaic.version = 11 : i64} {
  func.func @_gat_attn_kernel(%arg0: i32, %arg1: memref<16x8xbf16, #tpu.memory_space<vmem>>, %arg2: memref<1x16xf32, #tpu.memory_space<vmem>>, %arg3: memref<16x1xf32, #tpu.memory_space<vmem>>, %arg4: memref<16x16xi8, #tpu.memory_space<vmem>>, %arg5: memref<1x8xf32, #tpu.memory_space<vmem>>, %arg6: memref<1x8xf32, #tpu.memory_space<vmem>>, %arg7: memref<16x8xf32, #tpu.memory_space<vmem>>) attributes {dimension_semantics = [#tpu.dimension_semantics<parallel>], iteration_bounds = array<i64: 1>, scalar_prefetch = 0 : i64, scratch_operands = 0 : i64, tpu.core_type = #tpu.core_type<tc>, window_params = [{pipeline_mode = #tpu.pipeline_mode<synchronous>, transform_indices = @transform_0, window_bounds = array<i64: 16, 8>}, {pipeline_mode = #tpu.pipeline_mode<synchronous>, transform_indices = @transform_1, window_bounds = array<i64: 1, 16>}, {transform_indices = @transform_2, window_bounds = array<i64: 16, 1>}, {transform_indices = @transform_3, window_bounds = array<i64: 16, 16>}, {pipeline_mode = #tpu.pipeline_mode<synchronous>, transform_indices = @transform_4, window_bounds = array<i64: 1, 8>}, {pipeline_mode = #tpu.pipeline_mode<synchronous>, transform_indices = @transform_5, window_bounds = array<i64: 1, 8>}, {transform_indices = @transform_6, window_bounds = array<i64: 16, 8>}]} {
    %c0 = arith.constant 0 : index
    %c0_0 = arith.constant 0 : index
    %0 = vector.load %arg4[%c0, %c0_0] : memref<16x16xi8, #tpu.memory_space<vmem>>, vector<16x16xi8>
    %c0_i8 = arith.constant 0 : i8
    %1 = vector.broadcast %c0_i8 : i8 to vector<16x16xi8>
    %2 = arith.cmpi ne, %0, %1 : vector<16x16xi8>
    %c0_1 = arith.constant 0 : index
    %c0_2 = arith.constant 0 : index
    %3 = vector.load %arg2[%c0_1, %c0_2] : memref<1x16xf32, #tpu.memory_space<vmem>>, vector<1x16xf32>
    %c0_3 = arith.constant 0 : index
    %c0_4 = arith.constant 0 : index
    %4 = vector.load %arg3[%c0_3, %c0_4] : memref<16x1xf32, #tpu.memory_space<vmem>>, vector<16x1xf32>
    %5 = vector.broadcast %4 : vector<16x1xf32> to vector<16x16xf32>
    %6 = vector.broadcast %3 : vector<1x16xf32> to vector<16x16xf32>
    %7 = arith.addf %5, %6 : vector<16x16xf32>
    %cst = arith.constant 2.000000e-01 : f32
    %8 = vector.broadcast %cst : f32 to vector<16x16xf32>
    %9 = arith.mulf %8, %7 : vector<16x16xf32>
    %10 = arith.maximumf %7, %9 : vector<16x16xf32>
    %cst_5 = arith.constant -1.000000e+30 : f32
    %11 = vector.broadcast %cst_5 : f32 to vector<16x16xf32>
    %12 = arith.select %2, %10, %11 : vector<16x16xi1>, vector<16x16xf32>
    %cst_6 = arith.constant dense<0xFF800000> : vector<16xf32>
    %13 = vector.multi_reduction <maximumf>, %12, %cst_6 [1] : vector<16x16xf32> to vector<16xf32>
    %14 = vector.shape_cast %13 : vector<16xf32> to vector<16x1xf32>
    %15 = vector.broadcast %14 : vector<16x1xf32> to vector<16x16xf32>
    %16 = arith.subf %12, %15 : vector<16x16xf32>
    %17 = math.exp %16 : vector<16x16xf32>
    %cst_7 = arith.constant dense<0.000000e+00> : vector<16xf32>
    %18 = vector.multi_reduction <add>, %17, %cst_7 [1] : vector<16x16xf32> to vector<16xf32>
    %19 = vector.shape_cast %18 : vector<16xf32> to vector<16x1xf32>
    %20 = arith.truncf %17 : vector<16x16xf32> to vector<16x16xbf16>
    %c0_8 = arith.constant 0 : index
    %c0_9 = arith.constant 0 : index
    %21 = vector.load %arg1[%c0_8, %c0_9] : memref<16x8xbf16, #tpu.memory_space<vmem>>, vector<16x8xbf16>
    %cst_10 = arith.constant dense<0.000000e+00> : vector<16x8xf32>
    %22 = tpu.matmul %20, %21, %cst_10 {dimension_numbers = #tpu.dot_dimension_numbers<[1], [0], [0], [1], [0, 0, 1, 1], [], []>} : vector<16x16xbf16>, vector<16x8xbf16>, vector<16x8xf32> -> vector<16x8xf32>
    %cst_11 = arith.constant 9.99999968E-21 : f32
    %23 = vector.broadcast %cst_11 : f32 to vector<16x1xf32>
    %24 = arith.maximumf %19, %23 : vector<16x1xf32>
    %25 = tpu.reciprocal %24 {approx = true} : vector<16x1xf32> -> vector<16x1xf32>
    %26 = vector.broadcast %25 : vector<16x1xf32> to vector<16x8xf32>
    %27 = arith.mulf %22, %26 : vector<16x8xf32>
    %c0_12 = arith.constant 0 : index
    %c0_13 = arith.constant 0 : index
    %28 = vector.load %arg7[%c0_12, %c0_13] : memref<16x8xf32, #tpu.memory_space<vmem>>, vector<16x8xf32>
    tpu.vector_store %arg7[%c0_12, %c0_13], %27 {strides = array<i32>} : memref<16x8xf32, #tpu.memory_space<vmem>>, vector<16x8xf32>,
    return
  }
  func.func @transform_0(%arg0: i32) -> (i32, i32) {
    %c0_i32 = arith.constant 0 : i32
    %c0_i32_0 = arith.constant 0 : i32
    %c0_i32_1 = arith.constant 0 : i32
    return %c0_i32, %c0_i32_0 : i32, i32
  }
  func.func @transform_1(%arg0: i32) -> (i32, i32) {
    %c0_i32 = arith.constant 0 : i32
    %c0_i32_0 = arith.constant 0 : i32
    %c0_i32_1 = arith.constant 0 : i32
    return %c0_i32, %c0_i32_0 : i32, i32
  }
  func.func @transform_2(%arg0: i32) -> (i32, i32) {
    %c0_i32 = arith.constant 0 : i32
    %c0_i32_0 = arith.constant 0 : i32
    return %arg0, %c0_i32 : i32, i32
  }
  func.func @transform_3(%arg0: i32) -> (i32, i32) {
    %c0_i32 = arith.constant 0 : i32
    %c0_i32_0 = arith.constant 0 : i32
    return %arg0, %c0_i32 : i32, i32
  }
  func.func @transform_4(%arg0: i32) -> (i32, i32) {
    %c0_i32 = arith.constant 0 : i32
    %c0_i32_0 = arith.constant 0 : i32
    %c0_i32_1 = arith.constant 0 : i32
    return %c0_i32, %c0_i32_0 : i32, i32
  }
  func.func @transform_5(%arg0: i32) -> (i32, i32) {
    %c0_i32 = arith.constant 0 : i32
    %c0_i32_0 = arith.constant 0 : i32
    %c0_i32_1 = arith.constant 0 : i32
    return %c0_i32, %c0_i32_0 : i32, i32
  }
  func.func @transform_6(%arg0: i32) -> (i32, i32) {
    %c0_i32 = arith.constant 0 : i32
    %c0_i32_0 = arith.constant 0 : i32
    return %arg0, %c0_i32 : i32, i32
  }
}

</mosaic_0001>

<llo_original>
// kernel: gat_forward.3
$region0: #{gat_forward.3}
  #allocation0 [shape = 'u32[]', space=smem, size = 0x4, offset = 0x4, fixed_abs, tag = 'smem constant byte address 0x4 - core index']
  #allocation1 [shape = 'u32[144,128]{1,0:T(1,128)}', space=vmem, size = 0x12000, scoped, tag = 'internal scratch']
  %s0 = inlined_call_operand.vmem [shape: bf16[16,8], index: 0, kind: input, shape index: {}]
  %s1 = inlined_call_operand.vmem [shape: f32[1,16], index: 1, kind: input, shape index: {}]
  %s2 = inlined_call_operand.vmem [shape: f32[16,1], index: 2, kind: input, shape index: {}]
  %s3 = inlined_call_operand.vmem [shape: s8[16,16], index: 3, kind: input, shape index: {}]
  %s4 = inlined_call_operand.vmem [shape: f32[1,8], index: 4, kind: input, shape index: {}]
  %s5 = inlined_call_operand.vmem [shape: f32[1,8], index: 5, kind: input, shape index: {}]
  %s6 = inlined_call_operand.vmem [shape: f32[16,8], index: 6, kind: output, shape index: {}]
  %s7 = sld [smem:[#allocation0]]
  $region34: #{gat_forward.3} parent=0
    _
  %s9 = ssub.s32 1, %s7
  %s10 = scalar_select 0, %s9, %s7
  // Predicated region
  $region2: #{gat_forward.3} parent=0 // pred_check
    _
  $region3: #{gat_forward.3} parent=0 // pred_check_branch
    %12 = sbr.rel (0) target = $region5
  $region4: #{gat_forward.3} parent=0 // pred_region
    _
  $region5: #{gat_forward.3} parent=0 // pred_fallthru
    _
  // Predicated region
  $region6: #{gat_forward.3} parent=0 // pred_check
    _
  $region7: #{gat_forward.3} parent=0 // pred_check_branch
    %14 = sbr.rel (0) target = $region9
  $region8: #{gat_forward.3} parent=0 // pred_region
    _
  $region9: #{gat_forward.3} parent=0 // pred_fallthru
    _
  // Predicated region
  $region10: #{gat_forward.3} parent=0 // pred_check
    _
  $region11: #{gat_forward.3} parent=0 // pred_check_branch
    %16 = sbr.rel (0) target = $region13
  $region12: #{gat_forward.3} parent=0 // pred_region
    _
  $region13: #{gat_forward.3} parent=0 // pred_fallthru
    _
  // Predicated region
  $region14: #{gat_forward.3} parent=0 // pred_check
    _
  $region15: #{gat_forward.3} parent=0 // pred_check_branch
    %18 = sbr.rel (0) target = $region17
  $region16: #{gat_forward.3} parent=0 // pred_region
    _
  $region17: #{gat_forward.3} parent=0 // pred_fallthru
    _
  // Predicated region
  $region18: #{gat_forward.3} parent=0 // pred_check
    _
  $region19: #{gat_forward.3} parent=0 // pred_check_branch
    %20 = sbr.rel (0) target = $region21
  $region20: #{gat_forward.3} parent=0 // pred_region
    _
  $region21: #{gat_forward.3} parent=0 // pred_fallthru
    _
  // Predicated region
  $region22: #{gat_forward.3} parent=0 // pred_check
    _
  $region23: #{gat_forward.3} parent=0 // pred_check_branch
    %22 = sbr.rel (0) target = $region25
  $region24: #{gat_forward.3} parent=0 // pred_region
    _
  $region25: #{gat_forward.3} parent=0 // pred_fallthru
    _
  %v26 = vld [vmem:[%s3] sm:$0x3]
  %v27 = vld [vmem:[%s3 + $0x2] sm:$0x3]
  %vm28 = vnez %v26
  %vm29 = vnez %v27
  %v30 = vld [vmem:[%s1] sm:$0x1]
  %v31 = vld [vmem:[%s2] sm:$0xff]
  %v32 = vld [vmem:[%s2 + $0x8] sm:$0xff]
  %34 = vset.pattern.permute.xlu0 0
  %35 = vperm.xlu0 %34, %v31
  %v36 = vpop.permute.xlu0 %35
  %39 = vset.pattern.permute.xlu0 0
  %40 = vperm.xlu0 %39, %v32
  %v41 = vpop.permute.xlu0 %40
  %v44 = vlaneseq
  %v45 = vshrl.u32 %v44, 7
  %v46 = vsub.s32 0, %v45
  %v47 = vrot.slane %v30, %v46
  %v49 = vadd.f32 %v36, %v47
  %v50 = vadd.f32 %v41, %v47
  %v51 = vmul.f32 %v49, 0.2
  %v52 = vmul.f32 %v50, 0.2
  %v53 = vmax.f32 %v49, %v51
  %v54 = vmax.f32 %v50, %v52
  %v55 = vsel %vm28, 16843009, 0
  %v56 = vsel %vm29, 16843009, 0
  %v57 = vunpack.c.0.s8 %v55
  %v58 = vunpack.c.0.s8 %v56
  %vm59 = vcmp.ne.s32.totalorder %v57, 0
  %vm60 = vcmp.ne.s32.totalorder %v58, 0
  %v61 = vsel %vm59, %v53, -1e+30
  %v62 = vsel %vm60, %v54, -1e+30
  %vm63 = vcmask 130048
  %v64 = vsel %vm63, %v61, -inf
  %65 = vmax.xlane.f32.xlu0 %v64
  %v66 = vpop.xlane.xlu0 %65
  %v67 = vsel %vm63, %v62, -inf
  %68 = vmax.xlane.f32.xlu0 %v67
  %v69 = vpop.xlane.xlu0 %68
  %v70 = vsub.f32 %v61, %v66
  %v71 = vsub.f32 %v62, %v69
  %v72 = vmul.f32 %v70, 1.442695
  %v73 = vpow.pop %v72
  %v74 = vmul.f32 %v71, 1.442695
  %v75 = vpow.pop %v74
  %v76 = vsel %vm63, %v73, 0.0
  %77 = vadd.xlane.f32.xlu0 %v76
  %v78 = vpop.xlane.xlu0 %77
  %v79 = vsel %vm63, %v75, 0.0
  %80 = vadd.xlane.f32.xlu0 %v79
  %v81 = vpop.xlane.xlu0 %80
  %v82 = vpack.c.bf16 %v75, %v73
  %v83 = vld [vmem:[%s0] sm:$0xf]
  %v84 = vld [vmem:[%s0 + $0x4] sm:$0xf]
  %v87 = vunpack.c.l.b16 %v83
  %v88 = vunpack.c.l.b16 %v84
  %v89 = vpack.c.b16 %v88, %v87
  %v92 = vsel %vm63, %v82, 0
  %94 = vmatprep.subr.bf16.mxu0 0
  %95 = vmatpush1.bf16.msra.mxu0 %v89
  %96 = vmatprep.subr.bf16.mxu0 0
  %97 = vmatpush1.bf16.msra.mxu0 0
  %98 = vmatprep.subr.bf16.mxu0 0
  %99 = vmatpush1.bf16.msra.mxu0 0
  %100 = vmatprep.subr.bf16.mxu0 0
  %101 = vmatpush1.bf16.msra.mxu0 0
  %102 = vmatprep.subr.bf16.mxu0 0
  %103 = vmatpush1.bf16.msra.mxu0 0
  %104 = vmatprep.subr.bf16.mxu0 0
  %105 = vmatpush1.bf16.msra.mxu0 0
  %106 = vmatprep.subr.bf16.mxu0 0
  %107 = vmatpush1.bf16.msra.mxu0 0
  %108 = vmatprep.subr.bf16.mxu0 0
  %109 = vmatpush1.bf16.msra.mxu0 0
  %110 = vmatprep.subr.bf16.mxu0 0
  %111 = vmatpush1.bf16.msra.mxu0 0
  %112 = vmatprep.subr.bf16.mxu0 0
  %113 = vmatpush1.bf16.msra.mxu0 0
  %114 = vmatprep.subr.bf16.mxu0 0
  %115 = vmatpush1.bf16.msra.mxu0 0
  %116 = vmatprep.subr.bf16.mxu0 0
  %117 = vmatpush1.bf16.msra.mxu0 0
  %118 = vmatprep.subr.bf16.mxu0 0
  %119 = vmatpush1.bf16.msra.mxu0 0
  %120 = vmatprep.subr.bf16.mxu0 0
  %121 = vmatpush1.bf16.msra.mxu0 0
  %122 = vmatprep.subr.bf16.mxu0 0
  %123 = vmatpush1.bf16.msra.mxu0 0
  %124 = vmatprep.subr.bf16.mxu0 0
  %125 = vmatpush1.bf16.msra.mxu0 0
  %126 = vmatprep.mubr.bf16.mxu0 0
  %127 = vmatmul.mubr.bf16.gmra.mrb[0].mxu0 %v92
  %v128 = vpop.f32.mrb[0].mxu0
  %v129 = vadd.f32 0.0, %v128
  %v130 = vpop.f32.mrb[0].mxu0
  %v131 = vpop.f32.mrb[0].mxu0
  %v132 = vadd.f32 0.0, %v131
  %v133 = vpop.f32.mrb[0].mxu0
  %134 = vdwg.mxu0
  %v135 = vmax.f32 %v78, 1e-20
  %v136 = vmax.f32 %v81, 1e-20
  %v137 = vrcp.pop %v135
  %v138 = vrcp.pop %v136
  %v139 = vmul.f32 %v129, %v137
  %v140 = vmul.f32 %v132, %v138
  %vm141 = vcmask 64512
  %142 = vst.msk [vmem:[%s6] sm:$0xff] %vm141, %v139
  %143 = vst.msk [vmem:[%s6 + $0x8] sm:$0xff] %vm141, %v140
  // Predicated region
  $region26: #{gat_forward.3} parent=0 // pred_check
    _
  $region27: #{gat_forward.3} parent=0 // pred_check_branch
    %145 = sbr.rel (0) target = $region29
  $region28: #{gat_forward.3} parent=0 // pred_region
    _
  $region29: #{gat_forward.3} parent=0 // pred_fallthru
    _
  // Predicated region
  $region30: #{gat_forward.3} parent=0 // pred_check
    _
  $region31: #{gat_forward.3} parent=0 // pred_check_branch
    %147 = sbr.rel (0) target = $region33
  $region32: #{gat_forward.3} parent=0 // pred_region
    _
  $region33: #{gat_forward.3} parent=0 // pred_fallthru
    _

// kernel: gat_forward.2
$region0: #{gat_forward.2}
  #allocation0 [shape = 'u32[]', space=smem, size = 0x4, offset = 0x4, fixed_abs, tag = 'smem constant byte address 0x4 - core index']
  #allocation1 [shape = 'u32[144,128]{1,0:T(1,128)}', space=vmem, size = 0x12000, scoped, tag = 'internal scratch']
  %s0 = inlined_call_operand.vmem [shape: bf16[16,64], index: 0, kind: input, shape index: {}]
  %s1 = inlined_call_operand.vmem [shape: f32[2,16], index: 1, kind: input, shape index: {}]
  %s2 = inlined_call_operand.vmem [shape: f32[16,2], index: 2, kind: input, shape index: {}]
  %s3 = inlined_call_operand.vmem [shape: s8[16,16], index: 3, kind: input, shape index: {}]
  %s4 = inlined_call_operand.vmem [shape: f32[1,64], index: 4, kind: input, shape index: {}]
  %s5 = inlined_call_operand.vmem [shape: f32[1,64], index: 5, kind: input, shape index: {}]
  %s6 = inlined_call_operand.vmem [shape: bf16[16,64], index: 6, kind: output, shape index: {}]
  %s7 = sld [smem:[#allocation0]]
  $region34: #{gat_forward.2} parent=0
    _
  %s9 = ssub.s32 1, %s7
  %s10 = scalar_select 0, %s9, %s7
  // Predicated region
  $region2: #{gat_forward.2} parent=0 // pred_check
    _
  $region3: #{gat_forward.2} parent=0 // pred_check_branch
    %12 = sbr.rel (0) target = $region5
  $region4: #{gat_forward.2} parent=0 // pred_region
    _
  $region5: #{gat_forward.2} parent=0 // pred_fallthru
    _
  // Predicated region
  $region6: #{gat_forward.2} parent=0 // pred_check
    _
  $region7: #{gat_forward.2} parent=0 // pred_check_branch
    %14 = sbr.rel (0) target = $region9
  $region8: #{gat_forward.2} parent=0 // pred_region
    _
  $region9: #{gat_forward.2} parent=0 // pred_fallthru
    _
  // Predicated region
  $region10: #{gat_forward.2} parent=0 // pred_check
    _
  $region11: #{gat_forward.2} parent=0 // pred_check_branch
    %16 = sbr.rel (0) target = $region13
  $region12: #{gat_forward.2} parent=0 // pred_region
    _
  $region13: #{gat_forward.2} parent=0 // pred_fallthru
    _
  // Predicated region
  $region14: #{gat_forward.2} parent=0 // pred_check
    _
  $region15: #{gat_forward.2} parent=0 // pred_check_branch
    %18 = sbr.rel (0) target = $region17
  $region16: #{gat_forward.2} parent=0 // pred_region
    _
  $region17: #{gat_forward.2} parent=0 // pred_fallthru
    _
  // Predicated region
  $region18: #{gat_forward.2} parent=0 // pred_check
    _
  $region19: #{gat_forward.2} parent=0 // pred_check_branch
    %20 = sbr.rel (0) target = $region21
  $region20: #{gat_forward.2} parent=0 // pred_region
    _
  $region21: #{gat_forward.2} parent=0 // pred_fallthru
    _
  // Predicated region
  $region22: #{gat_forward.2} parent=0 // pred_check
    _
  $region23: #{gat_forward.2} parent=0 // pred_check_branch
    %22 = sbr.rel (0) target = $region25
  $region24: #{gat_forward.2} parent=0 // pred_region
    _
  $region25: #{gat_forward.2} parent=0 // pred_fallthru
    _
  %v26 = vld [vmem:[%s3] sm:$0x3]
  %v27 = vld [vmem:[%s3 + $0x2] sm:$0x3]
  %vm28 = vnez %v26
  %vm29 = vnez %v27
  %v30 = vld [vmem:[%s1] sm:$0x1]
  %v31 = vld [vmem:[%s2] sm:$0xff]
  %v32 = vld [vmem:[%s2 + $0x8] sm:$0xff]
  %34 = vset.pattern.permute.xlu0 0
  %35 = vperm.xlu0 %34, %v31
  %v36 = vpop.permute.xlu0 %35
  %39 = vset.pattern.permute.xlu0 0
  %40 = vperm.xlu0 %39, %v32
  %v41 = vpop.permute.xlu0 %40
  %v43 = vlaneseq
  %v44 = vshrl.u32 %v43, 7
  %v45 = vsub.s32 0, %v44
  %v46 = vrot.slane %v30, %v45
  %v47 = vadd.f32 %v36, %v46
  %v48 = vadd.f32 %v41, %v46
  %v49 = vmul.f32 %v47, 0.2
  %v50 = vmul.f32 %v48, 0.2
  %v51 = vmax.f32 %v47, %v49
  %v52 = vmax.f32 %v48, %v50
  %v53 = vsel %vm28, 16843009, 0
  %v54 = vsel %vm29, 16843009, 0
  %v55 = vunpack.c.0.s8 %v53
  %v56 = vunpack.c.0.s8 %v54
  %vm57 = vcmp.ne.s32.totalorder %v55, 0
  %vm58 = vcmp.ne.s32.totalorder %v56, 0
  %v59 = vsel %vm57, %v51, -1e+30
  %v60 = vsel %vm58, %v52, -1e+30
  %vm61 = vcmask 130048
  %v62 = vsel %vm61, %v59, -inf
  %63 = vmax.xlane.f32.xlu0 %v62
  %v64 = vpop.xlane.xlu0 %63
  %v65 = vsel %vm61, %v60, -inf
  %66 = vmax.xlane.f32.xlu0 %v65
  %v67 = vpop.xlane.xlu0 %66
  %v68 = vsub.f32 %v59, %v64
  %v69 = vsub.f32 %v60, %v67
  %v70 = vmul.f32 %v68, 1.442695
  %v71 = vpow.pop %v70
  %v72 = vmul.f32 %v69, 1.442695
  %v73 = vpow.pop %v72
  %v74 = vsel %vm61, %v71, 0.0
  %75 = vadd.xlane.f32.xlu0 %v74
  %v76 = vpop.xlane.xlu0 %75
  %v77 = vsel %vm61, %v73, 0.0
  %78 = vadd.xlane.f32.xlu0 %v77
  %v79 = vpop.xlane.xlu0 %78
  %v80 = vpack.c.bf16 %v73, %v71
  %v81 = vld [vmem:[%s0] sm:$0xf]
  %v82 = vld [vmem:[%s0 + $0x4] sm:$0xf]
  %v85 = vunpack.c.l.b16 %v81
  %v86 = vunpack.c.l.b16 %v82
  %v87 = vpack.c.b16 %v86, %v85
  %v90 = vsel %vm61, %v80, 0
  %92 = vmatprep.subr.bf16.mxu0 0
  %93 = vmatpush1.bf16.msra.mxu0 %v87
  %94 = vmatprep.subr.bf16.mxu0 0
  %95 = vmatpush1.bf16.msra.mxu0 0
  %96 = vmatprep.subr.bf16.mxu0 0
  %97 = vmatpush1.bf16.msra.mxu0 0
  %98 = vmatprep.subr.bf16.mxu0 0
  %99 = vmatpush1.bf16.msra.mxu0 0
  %100 = vmatprep.subr.bf16.mxu0 0
  %101 = vmatpush1.bf16.msra.mxu0 0
  %102 = vmatprep.subr.bf16.mxu0 0
  %103 = vmatpush1.bf16.msra.mxu0 0
  %104 = vmatprep.subr.bf16.mxu0 0
  %105 = vmatpush1.bf16.msra.mxu0 0
  %106 = vmatprep.subr.bf16.mxu0 0
  %107 = vmatpush1.bf16.msra.mxu0 0
  %108 = vmatprep.subr.bf16.mxu0 0
  %109 = vmatpush1.bf16.msra.mxu0 0
  %110 = vmatprep.subr.bf16.mxu0 0
  %111 = vmatpush1.bf16.msra.mxu0 0
  %112 = vmatprep.subr.bf16.mxu0 0
  %113 = vmatpush1.bf16.msra.mxu0 0
  %114 = vmatprep.subr.bf16.mxu0 0
  %115 = vmatpush1.bf16.msra.mxu0 0
  %116 = vmatprep.subr.bf16.mxu0 0
  %117 = vmatpush1.bf16.msra.mxu0 0
  %118 = vmatprep.subr.bf16.mxu0 0
  %119 = vmatpush1.bf16.msra.mxu0 0
  %120 = vmatprep.subr.bf16.mxu0 0
  %121 = vmatpush1.bf16.msra.mxu0 0
  %122 = vmatprep.subr.bf16.mxu0 0
  %123 = vmatpush1.bf16.msra.mxu0 0
  %124 = vmatprep.mubr.bf16.mxu0 0
  %125 = vmatmul.mubr.bf16.gmra.mrb[0].mxu0 %v90
  %v126 = vpop.f32.mrb[0].mxu0
  %v127 = vadd.f32 0.0, %v126
  %v128 = vpop.f32.mrb[0].mxu0
  %v129 = vpop.f32.mrb[0].mxu0
  %v130 = vadd.f32 0.0, %v129
  %v131 = vpop.f32.mrb[0].mxu0
  %132 = vdwg.mxu0
  %v133 = vmax.f32 %v76, 1e-20
  %v134 = vmax.f32 %v79, 1e-20
  %v135 = vrcp.pop %v133
  %v136 = vrcp.pop %v134
  %v137 = vmul.f32 %v127, %v135
  %v138 = vmul.f32 %v130, %v136
  %v139 = vld [vmem:[%s4] sm:$0x1]
  %v141 = vlaneseq
  %v142 = vshrl.u32 %v141, 7
  %v143 = vsub.s32 0, %v142
  %v144 = vrot.slane %v139, %v143
  %v146 = vmul.f32 %v137, %v144
  %v147 = vmul.f32 %v138, %v144
  %v148 = vld [vmem:[%s5] sm:$0x1]
  %v150 = vlaneseq
  %v151 = vshrl.u32 %v150, 7
  %v152 = vsub.s32 0, %v151
  %v153 = vrot.slane %v148, %v152
  %v155 = vadd.f32 %v146, %v153
  %v156 = vadd.f32 %v147, %v153
  %v157 = vmax.f32 %v155, 0.0
  %v158 = vmax.f32 %v156, 0.0
  %v159 = vpack.c.bf16 %v158, %v157
  %vm160 = vcmask 261120
  %161 = vst.msk [vmem:[%s6] sm:$0xff] %vm160, %v159
  %v162 = vld [vmem:[%s1 + $0x1] sm:$0x1]
  %v163 = vld [vmem:[%s2] sm:$0xff]
  %v164 = vld [vmem:[%s2 + $0x8] sm:$0xff]
  %166 = vset.pattern.permute.xlu0 1
  %167 = vperm.xlu0 %166, %v163
  %v168 = vpop.permute.xlu0 %167
  %171 = vset.pattern.permute.xlu0 1
  %172 = vperm.xlu0 %171, %v164
  %v173 = vpop.permute.xlu0 %172
  %v175 = vlaneseq
  %v176 = vshrl.u32 %v175, 7
  %v177 = vsub.s32 0, %v176
  %v178 = vrot.slane %v162, %v177
  %v179 = vadd.f32 %v168, %v178
  %v180 = vadd.f32 %v173, %v178
  %v181 = vmul.f32 %v179, 0.2
  %v182 = vmul.f32 %v180, 0.2
  %v183 = vmax.f32 %v179, %v181
  %v184 = vmax.f32 %v180, %v182
  %v185 = vsel %vm57, %v183, -1e+30
  %v186 = vsel %vm58, %v184, -1e+30
  %v187 = vsel %vm61, %v185, -inf
  %188 = vmax.xlane.f32.xlu0 %v187
  %v189 = vpop.xlane.xlu0 %188
  %v190 = vsel %vm61, %v186, -inf
  %191 = vmax.xlane.f32.xlu0 %v190
  %v192 = vpop.xlane.xlu0 %191
  %v193 = vsub.f32 %v185, %v189
  %v194 = vsub.f32 %v186, %v192
  %v195 = vmul.f32 %v193, 1.442695
  %v196 = vpow.pop %v195
  %v197 = vmul.f32 %v194, 1.442695
  %v198 = vpow.pop %v197
  %v199 = vsel %vm61, %v196, 0.0
  %200 = vadd.xlane.f32.xlu0 %v199
  %v201 = vpop.xlane.xlu0 %200
  %v202 = vsel %vm61, %v198, 0.0
  %203 = vadd.xlane.f32.xlu0 %v202
  %v204 = vpop.xlane.xlu0 %203
  %v205 = vpack.c.bf16 %v198, %v196
  %v206 = vld [vmem:[%s0] sm:$0xf]
  %v207 = vld [vmem:[%s0 + $0x4] sm:$0xf]
  %v210 = vunpack.c.l.b16 %v206
  %v211 = vunpack.c.l.b16 %v207
  %v212 = vpack.c.b16 %v211, %v210
  %213 = vrot.lane.b32.xlu0 %v212, 96
  %v214 = vpop.permute.xlu0 %213
  %v217 = vsel %vm61, %v205, 0
  %219 = vmatprep.subr.bf16.mxu0 0
  %220 = vmatpush1.bf16.msra.mxu0 %v214
  %221 = vmatprep.subr.bf16.mxu0 0
  %222 = vmatpush1.bf16.msra.mxu0 0
  %223 = vmatprep.subr.bf16.mxu0 0
  %224 = vmatpush1.bf16.msra.mxu0 0
  %225 = vmatprep.subr.bf16.mxu0 0
  %226 = vmatpush1.bf16.msra.mxu0 0
  %227 = vmatprep.subr.bf16.mxu0 0
  %228 = vmatpush1.bf16.msra.mxu0 0
  %229 = vmatprep.subr.bf16.mxu0 0
  %230 = vmatpush1.bf16.msra.mxu0 0
  %231 = vmatprep.subr.bf16.mxu0 0
  %232 = vmatpush1.bf16.msra.mxu0 0
  %233 = vmatprep.subr.bf16.mxu0 0
  %234 = vmatpush1.bf16.msra.mxu0 0
  %235 = vmatprep.subr.bf16.mxu0 0
  %236 = vmatpush1.bf16.msra.mxu0 0
  %237 = vmatprep.subr.bf16.mxu0 0
  %238 = vmatpush1.bf16.msra.mxu0 0
  %239 = vmatprep.subr.bf16.mxu0 0
  %240 = vmatpush1.bf16.msra.mxu0 0
  %241 = vmatprep.subr.bf16.mxu0 0
  %242 = vmatpush1.bf16.msra.mxu0 0
  %243 = vmatprep.subr.bf16.mxu0 0
  %244 = vmatpush1.bf16.msra.mxu0 0
  %245 = vmatprep.subr.bf16.mxu0 0
  %246 = vmatpush1.bf16.msra.mxu0 0
  %247 = vmatprep.subr.bf16.mxu0 0
  %248 = vmatpush1.bf16.msra.mxu0 0
  %249 = vmatprep.subr.bf16.mxu0 0
  %250 = vmatpush1.bf16.msra.mxu0 0
  %251 = vmatprep.mubr.bf16.mxu0 0
  %252 = vmatmul.mubr.bf16.gmra.mrb[0].mxu0 %v217
  %v253 = vpop.f32.mrb[0].mxu0
  %v254 = vadd.f32 0.0, %v253
  %v255 = vpop.f32.mrb[0].mxu0
  %v256 = vpop.f32.mrb[0].mxu0
  %v257 = vadd.f32 0.0, %v256
  %v258 = vpop.f32.mrb[0].mxu0
  %259 = vdwg.mxu0
  %v260 = vmax.f32 %v201, 1e-20
  %v261 = vmax.f32 %v204, 1e-20
  %v262 = vrcp.pop %v260
  %v263 = vrcp.pop %v261
  %v264 = vmul.f32 %v254, %v262
  %v265 = vmul.f32 %v257, %v263
  %v266 = vld [vmem:[%s4] sm:$0x1]
  %v268 = vlaneseq
  %v269 = vshrl.u32 %v268, 7
  %v270 = vsub.s32 0, %v269
  %v271 = vrot.slane %v266, %v270
  %272 = vrot.lane.b32.xlu0 %v271, 96
  %v273 = vpop.permute.xlu0 %272
  %v275 = vmul.f32 %v264, %v273
  %v276 = vmul.f32 %v265, %v273
  %v277 = vld [vmem:[%s5] sm:$0x1]
  %v279 = vlaneseq
  %v280 = vshrl.u32 %v279, 7
  %v281 = vsub.s32 0, %v280
  %v282 = vrot.slane %v277, %v281
  %283 = vrot.lane.b32.xlu0 %v282, 96
  %v284 = vpop.permute.xlu0 %283
  %v286 = vadd.f32 %v275, %v284
  %v287 = vadd.f32 %v276, %v284
  %v288 = vmax.f32 %v286, 0.0
  %v289 = vmax.f32 %v287, 0.0
  %v290 = vpack.c.bf16 %v289, %v288
  %292 = vrot.lane.b32.xlu0 %v290, 32
  %v293 = vpop.permute.xlu0 %292
  %vm295 = vcmask 523520
  %296 = vst.msk [vmem:[%s6] sm:$0xff] %vm295, %v293
  // Predicated region
  $region26: #{gat_forward.2} parent=0 // pred_check
    _
  $region27: #{gat_forward.2} parent=0 // pred_check_branch
    %298 = sbr.rel (0) target = $region29
  $region28: #{gat_forward.2} parent=0 // pred_region
    _
  $region29: #{gat_forward.2} parent=0 // pred_fallthru
    _
  // Predicated region
  $region30: #{gat_forward.2} parent=0 // pred_check
    _
  $region31: #{gat_forward.2} parent=0 // pred_check_branch
    %300 = sbr.rel (0) target = $region33
  $region32: #{gat_forward.2} parent=0 // pred_region
    _
  $region33: #{gat_forward.2} parent=0 // pred_fallthru
    _

</llo_original>
